<compile_context>
chip_gen: v5e
topology: v5e:2x2
jax: 0.10.0
libtpu: 0.0.40
codegen_flags: <defaults>
</compile_context>

<pallas_src>
import jax
import jax.numpy as jnp
from jax.experimental import pallas as pl
from jax.experimental.pallas import tpu as pltpu

LANES = 128
CHUNK_ROWS = 512  # inner-loop chunk (bounds VALU live ranges inside a block)


def _tpu_config():
    """Per-generation (num_splits, block_bytes, vmem_limit_bytes)."""
    try:
        kind = jax.devices()[0].device_kind.lower()
    except Exception:  # pragma: no cover
        kind = ""
    mib = 1024 * 1024
    if "v7" in kind or "tpu7" in kind:
        # 2 TCs/chip, 64 MiB VMEM/TC, ~3.2 TB/s: big blocks, raised scoped VMEM.
        return dict(num_splits=2, block_bytes=8 * mib, vmem_limit=48 * mib)
    if "v6" in kind:
        # 1 TC, 128 MiB VMEM: 8 MiB blocks with a raised scoped-VMEM limit.
        return dict(num_splits=1, block_bytes=8 * mib, vmem_limit=48 * mib)
    if "v5e" in kind or ("v5" in kind and "lite" in kind):
        # 1 TC, 16 MiB default scoped VMEM: stay at 2 MiB blocks (2x2x2=8 MiB).
        return dict(num_splits=1, block_bytes=2 * mib, vmem_limit=None)
    if "v4" in kind or "v5p" in kind or "v5" in kind:
        # Dual-TensorCore chips with 128 MiB VMEM.
        return dict(num_splits=2, block_bytes=8 * mib, vmem_limit=48 * mib)
    # Unknown chip / interpreter: conservative defaults.
    return dict(num_splits=1, block_bytes=2 * mib, vmem_limit=None)


def _make_kernel(tile_rows, chunk_rows, steps, rows_valid, needs_mask):
    n_chunks = tile_rows // chunk_rows
    aligned = (chunk_rows % 8) == 0

    def kernel(x_ref, t_ref, loss_ref, acc_ref):
        # Zero the per-core vector accumulator at the start of this core's slice.
        @pl.when(pl.program_id(1) == 0)
        def _init():
            acc_ref[...] = jnp.zeros_like(acc_ref)

        # Logical (unclamped) first row of this block; used only for tail masking.
        block_row0 = (pl.program_id(0) * steps + pl.program_id(1)) * tile_rows

        def accumulate(x, t, chunk_row0):
            d = x.astype(jnp.float32) - t.astype(jnp.float32)
            if needs_mask:
                rid = chunk_row0 + jax.lax.broadcasted_iota(
                    jnp.int32, (chunk_rows, LANES), 0)
                d = jnp.where(rid < rows_valid, d, 0.0)
            dd = d * d
            if aligned:
                # Fold sublane groups onto the (8, LANES) accumulator: pure VPU
                # vreg-aligned adds, no cross-lane work in the steady state.
                acc_ref[...] += jnp.sum(
                    dd.reshape(chunk_rows // 8, 8, LANES), axis=0)
            else:
                # Tiny-array fallback (block smaller than one sublane group).
                acc_ref[0:1, :] += jnp.sum(dd, axis=0, keepdims=True)

        if n_chunks == 1:
            accumulate(x_ref[...], t_ref[...], block_row0)
        else:
            def body(j, carry):
                r0 = pl.multiple_of(j * chunk_rows, chunk_rows)
                accumulate(x_ref[pl.ds(r0, chunk_rows), :],
                           t_ref[pl.ds(r0, chunk_rows), :],
                           block_row0 + r0)
                return carry
            jax.lax.fori_loop(0, n_chunks, body, 0, unroll=False)

        # Single cross-lane reduce + scalar SMEM store on the slice's last step.
        @pl.when(pl.program_id(1) == pl.num_programs(1) - 1)
        def _fin():
            loss_ref[0, 0] = jnp.sum(acc_ref[...])

    return kernel


def content_loss(x, target):
    """ContentLoss.forward: returns (input_passthrough, mse_loss(input, target))."""
    assert x.shape == target.shape, "input and target must have the same shape"
    cfg = _tpu_config()
    n_total = x.size
    itemsize = jnp.dtype(x.dtype).itemsize
    sub = max(8, 32 // itemsize)  # sublane packing: 8 (f32), 16 (bf16), 32 (int8)

    x_flat = x.reshape(-1)
    t_flat = target.reshape(-1)
    # Minimal padding: only when the element count is not a multiple of 128 and
    # only by <128 elements (padded entries contribute (0-0)^2 = 0).  The common
    # NN-feature-map case takes the copy-free reshape path.
    rem = n_total % LANES
    if rem:
        x_flat = jnp.pad(x_flat, (0, LANES - rem))
        t_flat = jnp.pad(t_flat, (0, LANES - rem))
    rows = x_flat.size // LANES
    x2 = x_flat.reshape(rows, LANES)
    t2 = t_flat.reshape(rows, LANES)

    # Block sizing: as large as the per-generation budget allows, multiple of the
    # dtype packing and (when large) of the inner chunk size.  The final block is
    # allowed to be short; no rounding of the array itself.
    cap_rows = max(sub, (cfg["block_bytes"] // (LANES * itemsize)) // sub * sub)
    if rows <= sub:
        tile_rows = rows                       # full-dim block for tiny inputs
    else:
        tile_rows = min(cap_rows, rows // sub * sub)
    if tile_rows > CHUNK_ROWS:
        tile_rows = tile_rows // CHUNK_ROWS * CHUNK_ROWS
        chunk_rows = CHUNK_ROWS
    else:
        chunk_rows = tile_rows

    total_blocks = pl.cdiv(rows, tile_rows)
    num_splits = cfg["num_splits"] if total_blocks >= cfg["num_splits"] else 1
    steps = pl.cdiv(total_blocks, num_splits)
    grid_blocks = num_splits * steps
    overrun = grid_blocks > total_blocks            # at most num_splits-1 blocks
    needs_mask = overrun or (rows % tile_rows != 0)
    last_block = total_blocks - 1

    def in_idx(c, i):
        b = c * steps + i
        if overrun:
            # Clamp so DMAs never target a fully out-of-bounds block; clamped
            # (duplicate) blocks are zeroed out by the in-kernel row mask.
            b = jnp.minimum(b, last_block)
        return (b, 0)

    kernel = _make_kernel(tile_rows, chunk_rows, steps, rows, needs_mask)

    cp_kwargs = dict(dimension_semantics=("parallel", "arbitrary"))
    if cfg["vmem_limit"] is not None:
        cp_kwargs["vmem_limit_bytes"] = cfg["vmem_limit"]

    partials = pl.pallas_call(
        kernel,
        out_shape=jax.ShapeDtypeStruct((num_splits, 1), jnp.float32),
        grid_spec=pltpu.PrefetchScalarGridSpec(
            num_scalar_prefetch=0,
            grid=(num_splits, steps),
            in_specs=[
                pl.BlockSpec((tile_rows, LANES), in_idx),
                pl.BlockSpec((tile_rows, LANES), in_idx),
            ],
            out_specs=pl.BlockSpec((1, 1), lambda c, i: (c, 0),
                                   memory_space=pltpu.SMEM),
            scratch_shapes=[pltpu.VMEM((8, LANES), jnp.float32)],
        ),
        compiler_params=pltpu.CompilerParams(**cp_kwargs),
    )(x2, t2)

    loss = jnp.sum(partials) / jnp.float32(n_total)
    # Identity pass-through is free: hand back the input array untouched.
    return x, loss


if __name__ == "__main__":
    key = jax.random.PRNGKey(0)
    k_in, k_tgt = jax.random.split(key)

    ok = True

    # Case 1: NCHW f32, small shape (matches the PyTorch module usage).
    B, C, H, W = 2, 4, 16, 16
    x = jax.random.normal(k_in, (B, C, H, W), dtype=jnp.float32)
    target = jax.random.normal(k_tgt, (B, C, H, W), dtype=jnp.float32)
    y, loss = jax.block_until_ready(content_loss(x, target))
    ref = jnp.mean((x - target) ** 2)
    ok &= bool(jnp.allclose(y, x))
    ok &= bool(jnp.allclose(loss, ref, rtol=1e-5, atol=1e-6))

    # Case 2: ragged shape (not a multiple of 128) exercises the minimal-pad path.
    xr = jax.random.normal(k_in, (2, 3, 5, 7), dtype=jnp.float32)
    tr = jax.random.normal(k_tgt, (2, 3, 5, 7), dtype=jnp.float32)
    yr, lossr = jax.block_until_ready(content_loss(xr, tr))
    refr = jnp.mean((xr - tr) ** 2)
    ok &= bool(jnp.allclose(yr, xr))
    ok &= bool(jnp.allclose(lossr, refr, rtol=1e-5, atol=1e-6))

    # Case 3: bf16 inputs (typical VGG feature dtype) with f32 accumulation.
    xb = jax.random.normal(k_in, (B, C, H, W), dtype=jnp.bfloat16)
    tb = jax.random.normal(k_tgt, (B, C, H, W), dtype=jnp.bfloat16)
    yb, lossb = jax.block_until_ready(content_loss(xb, tb))
    refb = jnp.mean((xb.astype(jnp.float32) - tb.astype(jnp.float32)) ** 2)
    ok &= bool(jnp.allclose(yb, xb))
    ok &= bool(jnp.allclose(lossb, refb, rtol=1e-5, atol=1e-6))

    # Case 4: larger, non-block-aligned row count (exercises clamp + tail mask).
    xl = jax.random.normal(k_in, (3, 7, 33, 128), dtype=jnp.float32)
    tl = jax.random.normal(k_tgt, (3, 7, 33, 128), dtype=jnp.float32)
    yl, lossl = jax.block_until_ready(content_loss(xl, tl))
    refl = jnp.mean((xl - tl) ** 2)
    ok &= bool(jnp.allclose(yl, xl))
    ok &= bool(jnp.allclose(lossl, refl, rtol=1e-5, atol=1e-6))

    assert ok, "ContentLoss Pallas kernel mismatch vs reference"
    print("KERNEL_OK")
</pallas_src>

<mosaic_0001>
module attributes {stable_mosaic.version = 11 : i64} {
  func.func @kernel(%arg0: i32, %arg1: i32, %arg2: memref<16x128xf32, #tpu.memory_space<vmem>>, %arg3: memref<16x128xf32, #tpu.memory_space<vmem>>, %arg4: memref<1x1xf32, #tpu.memory_space<smem>>, %arg5: memref<8x128xf32, #tpu.memory_space<vmem>>) attributes {dimension_semantics = [#tpu.dimension_semantics<parallel>, #tpu.dimension_semantics<arbitrary>], iteration_bounds = array<i64: 1, 1>, scalar_prefetch = 0 : i64, scratch_operands = 1 : i64, tpu.core_type = #tpu.core_type<tc>, window_params = [{transform_indices = @transform_0, window_bounds = array<i64: 16, 128>}, {transform_indices = @transform_1, window_bounds = array<i64: 16, 128>}, {transform_indices = @transform_2, window_bounds = array<i64: 1, 1>}]} {
    %c0_i32 = arith.constant 0 : i32
    %0 = arith.cmpi eq, %arg1, %c0_i32 : i32
    %1 = arith.extui %0 : i1 to i32
    %c0_i32_0 = arith.constant 0 : i32
    %2 = arith.cmpi ne, %1, %c0_i32_0 : i32
    scf.if %2 {
      %cst_10 = arith.constant 0.000000e+00 : f32
      %15 = vector.broadcast %cst_10 : f32 to vector<8x128xf32>
      %c0_11 = arith.constant 0 : index
      %c0_12 = arith.constant 0 : index
      %16 = vector.load %arg5[%c0_11, %c0_12] : memref<8x128xf32, #tpu.memory_space<vmem>>, vector<8x128xf32>
      tpu.vector_store %arg5[%c0_11, %c0_12], %15 {strides = array<i32>} : memref<8x128xf32, #tpu.memory_space<vmem>>, vector<8x128xf32>,
    } else {
    }
    %c0 = arith.constant 0 : index
    %c0_1 = arith.constant 0 : index
    %3 = vector.load %arg2[%c0, %c0_1] : memref<16x128xf32, #tpu.memory_space<vmem>>, vector<16x128xf32>
    %c0_2 = arith.constant 0 : index
    %c0_3 = arith.constant 0 : index
    %4 = vector.load %arg3[%c0_2, %c0_3] : memref<16x128xf32, #tpu.memory_space<vmem>>, vector<16x128xf32>
    %5 = arith.subf %3, %4 : vector<16x128xf32>
    %6 = arith.mulf %5, %5 : vector<16x128xf32>
    %c0_4 = arith.constant 0 : index
    %c0_5 = arith.constant 0 : index
    %7 = vector.load %arg5[%c0_4, %c0_5] : memref<8x128xf32, #tpu.memory_space<vmem>>, vector<8x128xf32>
    %8 = vector.shape_cast %6 : vector<16x128xf32> to vector<2x8x128xf32>
    %cst = arith.constant dense<0.000000e+00> : vector<8x128xf32>
    %9 = vector.multi_reduction <add>, %8, %cst [0] : vector<2x8x128xf32> to vector<8x128xf32>
    %10 = arith.addf %7, %9 : vector<8x128xf32>
    %c0_6 = arith.constant 0 : index
    %c0_7 = arith.constant 0 : index
    %11 = vector.load %arg5[%c0_6, %c0_7] : memref<8x128xf32, #tpu.memory_space<vmem>>, vector<8x128xf32>
    tpu.vector_store %arg5[%c0_6, %c0_7], %10 {strides = array<i32>} : memref<8x128xf32, #tpu.memory_space<vmem>>, vector<8x128xf32>,
    %c0_i32_8 = arith.constant 0 : i32
    %12 = arith.cmpi eq, %arg1, %c0_i32_8 : i32
    %13 = arith.extui %12 : i1 to i32
    %c0_i32_9 = arith.constant 0 : i32
    %14 = arith.cmpi ne, %13, %c0_i32_9 : i32
    scf.if %14 {
      %c0_10 = arith.constant 0 : index
      %c0_11 = arith.constant 0 : index
      %15 = vector.load %arg5[%c0_10, %c0_11] : memref<8x128xf32, #tpu.memory_space<vmem>>, vector<8x128xf32>
      %16 = vector.shape_cast %15 : vector<8x128xf32> to vector<1x8x128xf32>
      %cst_12 = arith.constant dense<0.000000e+00> : vector<1xf32>
      %17 = vector.multi_reduction <add>, %16, %cst_12 [1, 2] : vector<1x8x128xf32> to vector<1xf32>
      %18 = vector.shape_cast %17 : vector<1xf32> to vector<1x1x1xf32>
      %19 = vector.extract %18[0, 0, 0] : f32 from vector<1x1x1xf32>
      %c0_13 = arith.constant 0 : index
      %c0_14 = arith.constant 0 : index
      %20 = memref.load %arg4[%c0_13, %c0_14] : memref<1x1xf32, #tpu.memory_space<smem>>
      memref.store %19, %arg4[%c0_13, %c0_14] : memref<1x1xf32, #tpu.memory_space<smem>>
    } else {
    }
    return
  }
  func.func @transform_0(%arg0: i32, %arg1: i32) -> (i32, i32) {
    %c1_i32 = arith.constant 1 : i32
    %0 = arith.muli %arg0, %c1_i32 : i32
    %1 = arith.addi %0, %arg1 : i32
    %c0_i32 = arith.constant 0 : i32
    %c0_i32_0 = arith.constant 0 : i32
    return %1, %c0_i32 : i32, i32
  }
  func.func @transform_1(%arg0: i32, %arg1: i32) -> (i32, i32) {
    %c1_i32 = arith.constant 1 : i32
    %0 = arith.muli %arg0, %c1_i32 : i32
    %1 = arith.addi %0, %arg1 : i32
    %c0_i32 = arith.constant 0 : i32
    %c0_i32_0 = arith.constant 0 : i32
    return %1, %c0_i32 : i32, i32
  }
  func.func @transform_2(%arg0: i32, %arg1: i32) -> (i32, i32) {
    %c0_i32 = arith.constant 0 : i32
    %c0_i32_0 = arith.constant 0 : i32
    return %arg0, %c0_i32 : i32, i32
  }
}

</mosaic_0001>

<llo_original>
// kernel: tpu_custom_call.1
$region0: #{tpu_custom_call.1}
  #allocation0 [shape = 'u32[]', space=smem, size = 0x4, offset = 0x4, fixed_abs, tag = 'smem constant byte address 0x4 - core index']
  #allocation1 [shape = 'u32[72,128]{1,0:T(1,128)}', space=vmem, size = 0x9000, scoped, tag = 'internal scratch']
  #allocation2 [shape = 'f32[8,128]{1,0:T(8,128)}', space=vmem, size = 0x1000, scoped, tag = 'scratch operand']
  %s0 = inlined_call_operand.hbm [shape: f32[16,128], index: 0, kind: input, shape index: {}]
  %s1 = inlined_call_operand.hbm [shape: f32[16,128], index: 1, kind: input, shape index: {}]
  %s2 = inlined_call_operand.hbm [shape: f32[1,1], index: 2, kind: output, shape index: {}]
  %s3 = sld [smem:[#allocation0]]
  $region34: #{tpu_custom_call.1} parent=0
    _
  %s5 = ssub.s32 1, %s3
  %s6 = scalar_select 0, %s5, %s3
  $region1: #{tpu_custom_call.1} parent=0
    #allocation3 [shape = 'u8[8192]{0}', space=vmem, size = 0x2000, scoped, tag = 'input window, operand 0, single buffered']
    #allocation4 [shape = 's32[1]{0}', space=sflag, size = 0x4, scoped, tag = 'scoped memory for tpu_custom_call.1']
    #allocation5 [shape = 's32[1]{0}', space=sflag, size = 0x4, scoped, tag = 'scoped memory for tpu_custom_call.1']
    #allocation6 [shape = 'u8[8192]{0}', space=vmem, size = 0x2000, scoped, tag = 'input window, operand 1, single buffered']
    #allocation7 [shape = 's32[1]{0}', space=sflag, size = 0x4, scoped, tag = 'scoped memory for tpu_custom_call.1']
    #allocation8 [shape = 'u8[512]{0}', space=smem, size = 0x200, scoped, tag = 'output window, operand 0, single buffered']
    %7 = vsyncpa [#allocation4], 0
    %8 = vsyncpa [#allocation7], 0
    %9 = vsyncpa [#allocation5], 0
    // Predicated region
    $region2: #{tpu_custom_call.1} parent=1 // pred_check
      _
    $region3: #{tpu_custom_call.1} parent=1 // pred_check_branch
      %11 = sbr.rel (0) target = $region5
    $region4: #{tpu_custom_call.1} parent=1 // pred_region
      %s12 = sadd.s32 0, 0
      %s13 = smul.u32 2, %s12
      %15 = vsyncadd [#allocation4], 0
      %s16 = smul.addr %s13, 8
      %s17 = scalar_lea.hbm %s0, %s16
      %s18 = sshll.u32 %s17, 4
      %s19 = int_to_ptr.hbm [resolvable:$true] %s18
      %s20 = sshll.u32 [#allocation3], 4
      %s21 = int_to_ptr.vmem [resolvable:$true] %s20
      %26 = dma.hbm_to_vmem [thread:$0]  %s19, 256, %s21, [#allocation4], 128, 128, 8
    $region5: #{tpu_custom_call.1} parent=1 // pred_fallthru
      _
    // Predicated region
    $region6: #{tpu_custom_call.1} parent=1 // pred_check
      _
    $region7: #{tpu_custom_call.1} parent=1 // pred_check_branch
      %28 = sbr.rel (0) target = $region9
    $region8: #{tpu_custom_call.1} parent=1 // pred_region
      %s29 = sadd.s32 0, 0
      %s30 = smul.u32 2, %s29
      %32 = vsyncadd [#allocation7], 0
      %s33 = smul.addr %s30, 8
      %s34 = scalar_lea.hbm %s1, %s33
      %s35 = sshll.u32 %s34, 4
      %s36 = int_to_ptr.hbm [resolvable:$true] %s35
      %s37 = sshll.u32 [#allocation6], 4
      %s38 = int_to_ptr.vmem [resolvable:$true] %s37
      %43 = dma.hbm_to_vmem [thread:$0]  %s36, 256, %s38, [#allocation7], 128, 128, 8
    $region9: #{tpu_custom_call.1} parent=1 // pred_fallthru
      _
    // Predicated region
    $region10: #{tpu_custom_call.1} parent=1 // pred_check
      _
    $region11: #{tpu_custom_call.1} parent=1 // pred_check_branch
      %45 = sbr.rel (0) target = $region13
    $region12: #{tpu_custom_call.1} parent=1 // pred_region
      %47 = dma.done [#allocation4], 256
    $region13: #{tpu_custom_call.1} parent=1 // pred_fallthru
      _
    // Predicated region
    $region14: #{tpu_custom_call.1} parent=1 // pred_check
      _
    $region15: #{tpu_custom_call.1} parent=1 // pred_check_branch
      %49 = sbr.rel (0) target = $region17
    $region16: #{tpu_custom_call.1} parent=1 // pred_region
      %51 = dma.done [#allocation7], 256
    $region17: #{tpu_custom_call.1} parent=1 // pred_fallthru
      _
    %s52 = sadd.s32 0, 0
    %s53 = smul.u32 2, %s52
    %s54 = sadd.s32 0, 0
    %s55 = smul.u32 2, %s54
    %p56 = scmp.eq.s32.totalorder 0, 0
    // Predicated region
    $region18: #{tpu_custom_call.1} parent=1 // pred_check
      %p57 = pneg %p56
    $region19: #{tpu_custom_call.1} parent=1 // pred_check_branch
      %59 = sbr.rel (%p57) target = $region21
    $region20: #{tpu_custom_call.1} parent=1 // pred_region
      %60 = vst [vmem:[#allocation2] sm:$0xff] 0.0
    $region21: #{tpu_custom_call.1} parent=1 // pred_fallthru
      _
    %v61 = vld [vmem:[#allocation3] sm:$0xff]
    %v62 = vld [vmem:[#allocation3 + $0x8] sm:$0xff]
    %v63 = vld [vmem:[#allocation6] sm:$0xff]
    %v64 = vld [vmem:[#allocation6 + $0x8] sm:$0xff]
    %v65 = vsub.f32 %v61, %v63
    %v66 = vsub.f32 %v62, %v64
    %v67 = vmul.f32 %v65, %v65
    %v68 = vmul.f32 %v66, %v66
    %v69 = vld [vmem:[#allocation2] sm:$0xff]
    %v70 = vadd.f32 %v67, %v68
    %v71 = vadd.f32 %v69, %v70
    %72 = vst [vmem:[#allocation2] sm:$0xff] %v71
    // Predicated region
    $region22: #{tpu_custom_call.1} parent=1 // pred_check
      %p73 = pneg %p56
    $region23: #{tpu_custom_call.1} parent=1 // pred_check_branch
      %75 = sbr.rel (%p73) target = $region25
    $region24: #{tpu_custom_call.1} parent=1 // pred_region
      %v76 = vld [vmem:[#allocation2] sm:$0xff]
      %77 = vadd.xlane.f32.xlu0 %v76
      %v78 = vpop.xlane.xlu0 %77
      %v79 = vrot.slane %v78, 4
      %v80 = vadd.f32 %v78, %v79
      %v81 = vrot.slane %v80, 2
      %v82 = vadd.f32 %v80, %v81
      %v83 = vrot.slane %v82, 1
      %v84 = vadd.f32 %v82, %v83
      %s85 = vtos %v84
      %s86 = scalar_lea.smem [#allocation8], 0
      %87 = sst [smem:[%s86]] %s85
    $region25: #{tpu_custom_call.1} parent=1 // pred_fallthru
      _
    // Predicated region
    $region26: #{tpu_custom_call.1} parent=1 // pred_check
      _
    $region27: #{tpu_custom_call.1} parent=1 // pred_check_branch
      %89 = sbr.rel (0) target = $region29
    $region28: #{tpu_custom_call.1} parent=1 // pred_region
      %91 = vsyncadd [#allocation5], 0
      %s93 = sshll.u32 %s2, 4
      %s94 = int_to_ptr.hbm [resolvable:$true] %s93
      %96 = dma.smem_to_hbm [#allocation8], 16, %s94, [#allocation5]
    $region29: #{tpu_custom_call.1} parent=1 // pred_fallthru
      _
    // Predicated region
    $region30: #{tpu_custom_call.1} parent=1 // pred_check
      _
    $region31: #{tpu_custom_call.1} parent=1 // pred_check_branch
      %98 = sbr.rel (0) target = $region33
    $region32: #{tpu_custom_call.1} parent=1 // pred_region
      %100 = dma.done [#allocation5], 16
    $region33: #{tpu_custom_call.1} parent=1 // pred_fallthru
      _
    %101 = sfence
    %102 = vsyncpa [#allocation4], 1
    %103 = vsyncpa [#allocation7], 1
    %104 = vsyncpa [#allocation5], 1

</llo_original>
